<compile_context>
chip_gen: v7x
topology: tpu7x:2x2x1
jax: 0.10.0
libtpu: 0.0.40
codegen_flags: <defaults>
</compile_context>

<pallas_src>
import functools

import jax
import jax.numpy as jnp
from jax import lax
from jax.experimental import pallas as pl
from jax.experimental.pallas import tpu as pltpu


def _conv3x3_kernel(x_ref, w_ref, o_ref, *, wpad):
    """One (batch, row-tile) step of the 3x3 conv.

    x_ref: (1, 1, Cin, (th+3)*wpad)  bf16 -- channels on sublanes; zero-padded
                                             spatial window flattened on lanes
                                             (row-major, row length wpad = W+2).
    w_ref: (9, Cout, Cin)            bf16 -- tap-major (dy*3+dx) conv weights.
    o_ref: (1, 1, Cout, th*wpad)     f32  -- flat spatial on lanes (lane-dense store).
    """
    cout = o_ref.shape[2]
    l_out = o_ref.shape[3]                     # th * wpad

    x = x_ref[0, 0]                            # (Cin, Lfull) -- loaded once
    # f32 accumulator; per the tile-size budget in the wrapper this stays small
    # enough to live in vregs (no explicit VMEM scratch needed: there is no
    # reduction grid axis, the whole tap sum happens inside one grid step).
    acc = jnp.zeros((cout, l_out), jnp.float32)
    for dy in range(3):
        for dx in range(3):
            s = dy * wpad + dx
            # Tap shift == static lane-offset slice of the flat spatial axis
            # (pure lane addressing, no reshape / im2col copy per tap).
            acc += jnp.dot(w_ref[dy * 3 + dx], x[:, s:s + l_out],
                           preferred_element_type=jnp.float32)
    o_ref[0, 0] = acc.astype(o_ref.dtype)


def _pick_row_tile(h, w, cout):
    """Largest divisor of H that keeps the f32 accumulator ~<=1 MiB and gives
    >=2 row tiles when possible (pipeline depth + 2-TC parallelism on v7x)."""
    budget = 1 << 20
    cap = max(8, budget // (cout * (w + 2) * 4))
    cap = min(cap, max(8, h // 2))
    th = max(1, min(h, cap))
    while h % th:
        th -= 1
    return th


def upsample_with_pixelshuffle(x_nchw, w_oihw, *, row_tile=None):
    """Forward pass of Upsample_with_PixelShuffle.

    x_nchw: (N, n_feat, H, W) f32;  w_oihw: (2*n_feat, n_feat, 3, 3) f32 (no bias).
    Returns (N, n_feat // 2, 2H, 2W) f32 (NCHW), matching the PyTorch module.
    """
    n, cin, h, w = x_nchw.shape
    cout = w_oihw.shape[0]
    assert w_oihw.shape == (cout, cin, 3, 3)
    assert cout == 2 * cin and cout % 4 == 0
    c_final = cout // 4

    th = row_tile or _pick_row_tile(h, w, cout)
    assert h % th == 0, (h, th)
    n_t = h // th
    wpad = w + 2                       # 1-px conv halo on both sides
    l_full = (th + 3) * wpad           # th rows + 1 top halo + 2 bottom (halo + slack)
    l_out = th * wpad

    # ---- input prep: one fused XLA pass (bf16 cast + zero pad + overlapping
    # row-tile windows + flatten).  NCHW already has channels leading, so no
    # layout transpose of the activations is required.
    xb = x_nchw.astype(jnp.bfloat16)
    xp = jnp.pad(xb, ((0, 0), (0, 0), (1, 2), (1, 1)))        # (N, Cin, H+3, W+2)
    xt = jnp.stack(
        [lax.slice_in_dim(xp, t * th, t * th + th + 3, axis=2) for t in range(n_t)],
        axis=1)                                               # (N, nT, Cin, th+3, W+2)
    xt = xt.reshape(n, n_t, cin, l_full)                      # flatten spatial -> lanes

    # ---- weights: tap-major (dy*3+dx, Cout, Cin), bf16 (tiny, DMA'd once).
    wt = jnp.transpose(w_oihw, (2, 3, 0, 1)).reshape(9, cout, cin).astype(jnp.bfloat16)

    kernel = functools.partial(_conv3x3_kernel, wpad=wpad)

    y = pl.pallas_call(
        kernel,
        out_shape=jax.ShapeDtypeStruct((n, n_t, cout, l_out), jnp.float32),
        grid_spec=pltpu.PrefetchScalarGridSpec(
            num_scalar_prefetch=0,
            grid=(n, n_t),
            in_specs=[
                pl.BlockSpec((1, 1, cin, l_full), lambda b, t: (b, t, 0, 0)),
                pl.BlockSpec((9, cout, cin), lambda b, t: (0, 0, 0)),
            ],
            out_specs=pl.BlockSpec((1, 1, cout, l_out), lambda b, t: (b, t, 0, 0)),
        ),
        compiler_params=pltpu.CompilerParams(
            dimension_semantics=("parallel", "parallel"),
            # Tile budget keeps buffers tiny; raise this for much larger tiles
            # (v5e/v6e have 128 MiB physical VMEM, v7x only 64 MiB).
            vmem_limit_bytes=32 * 1024 * 1024,
        ),
    )(xt, wt)

    # ---- decode: crop width halo + PixelShuffle(2) + NCHW, all folded into the
    # single output transpose pass the NCHW module interface requires anyway.
    y = y.reshape(n, n_t, cout, th, wpad)[..., :w]            # (N, nT, Cout, th, W)
    y = y.reshape(n, n_t, c_final, 2, 2, th, w)               # (.., c, i, j, h, w)
    y = jnp.transpose(y, (0, 2, 1, 5, 3, 6, 4))               # (N, C, nT, th, i, W, j)
    return y.reshape(n, c_final, 2 * h, 2 * w)


def _reference(x_nchw, w_oihw):
    # Pure-JAX reference: conv (XLA, full precision) + pixel shuffle, NCHW end-to-end.
    y = lax.conv_general_dilated(
        x_nchw, w_oihw, window_strides=(1, 1), padding=((1, 1), (1, 1)),
        dimension_numbers=("NCHW", "OIHW", "NCHW"),
        precision=lax.Precision.HIGHEST)
    n, crr, hh, ww = y.shape
    r = 2
    c = crr // (r * r)
    y = y.reshape(n, c, r, r, hh, ww)
    y = jnp.transpose(y, (0, 1, 4, 2, 5, 3))
    return y.reshape(n, c, hh * r, ww * r)


if __name__ == "__main__":
    n_feat = 4
    N, H, W = 2, 16, 16

    key = jax.random.PRNGKey(0)
    kx, kw = jax.random.split(key)
    x = jax.random.normal(kx, (N, n_feat, H, W), dtype=jnp.float32)
    # Deterministic synthetic weights, shape of nn.Conv2d(n_feat, 2*n_feat, 3, bias=False)
    w = (jax.random.normal(kw, (2 * n_feat, n_feat, 3, 3), dtype=jnp.float32)
         * (1.0 / (n_feat * 9) ** 0.5))

    out = jax.jit(upsample_with_pixelshuffle)(x, w)
    out = jax.block_until_ready(out)
    assert out.shape == (N, n_feat // 2, 2 * H, 2 * W), out.shape

    # The kernel feeds the MXU bf16 operands (with f32 accumulation), so compare
    # against a reference that sees the same bf16-rounded inputs; agreement is then
    # limited only by f32 summation order (~1e-6).
    x_bf = x.astype(jnp.bfloat16).astype(jnp.float32)
    w_bf = w.astype(jnp.bfloat16).astype(jnp.float32)
    ref = _reference(x_bf, w_bf)
    assert jnp.allclose(out, ref, atol=1e-4, rtol=1e-4), float(
        jnp.max(jnp.abs(out - ref)))

    print("KERNEL_OK")
</pallas_src>

<mosaic_0001>
module attributes {stable_mosaic.version = 11 : i64} {
  func.func @_conv3x3_kernel(%arg0: i32, %arg1: i32, %arg2: memref<1x1x4x198xbf16, #tpu.memory_space<vmem>>, %arg3: memref<9x8x4xbf16, #tpu.memory_space<vmem>>, %arg4: memref<1x1x8x144xf32, #tpu.memory_space<vmem>>) attributes {dimension_semantics = [#tpu.dimension_semantics<parallel>, #tpu.dimension_semantics<parallel>], iteration_bounds = array<i64: 2, 2>, scalar_prefetch = 0 : i64, scratch_operands = 0 : i64, tpu.core_type = #tpu.core_type<tc>, window_params = [{transform_indices = @transform_0, window_bounds = array<i64: 1, 1, 4, 198>}, {pipeline_mode = #tpu.pipeline_mode<synchronous>, transform_indices = @transform_1, window_bounds = array<i64: 9, 8, 4>}, {transform_indices = @transform_2, window_bounds = array<i64: 1, 1, 8, 144>}]} {
    %c0 = arith.constant 0 : index
    %c0_0 = arith.constant 0 : index
    %c0_1 = arith.constant 0 : index
    %c0_2 = arith.constant 0 : index
    %0 = vector.load %arg2[%c0, %c0_0, %c0_1, %c0_2] : memref<1x1x4x198xbf16, #tpu.memory_space<vmem>>, vector<1x1x4x198xbf16>
    %1 = vector.shape_cast %0 : vector<1x1x4x198xbf16> to vector<4x198xbf16>
    %cst = arith.constant 0.000000e+00 : f32
    %2 = vector.broadcast %cst : f32 to vector<8x144xf32>
    %c0_3 = arith.constant 0 : index
    %c0_4 = arith.constant 0 : index
    %c0_5 = arith.constant 0 : index
    %3 = vector.load %arg3[%c0_3, %c0_4, %c0_5] : memref<9x8x4xbf16, #tpu.memory_space<vmem>>, vector<1x8x4xbf16>
    %4 = vector.shape_cast %3 : vector<1x8x4xbf16> to vector<8x4xbf16>
    %5 = vector.extract_strided_slice %1 {offsets = [0, 0], sizes = [4, 144], strides = [1, 1]} : vector<4x198xbf16> to vector<4x144xbf16>
    %cst_6 = arith.constant dense<0.000000e+00> : vector<8x144xf32>
    %6 = tpu.matmul %4, %5, %cst_6 {dimension_numbers = #tpu.dot_dimension_numbers<[1], [0], [0], [1], [0, 0, 1, 1], [], []>} : vector<8x4xbf16>, vector<4x144xbf16>, vector<8x144xf32> -> vector<8x144xf32>
    %7 = arith.addf %2, %6 : vector<8x144xf32>
    %c1 = arith.constant 1 : index
    %c0_7 = arith.constant 0 : index
    %c0_8 = arith.constant 0 : index
    %8 = vector.load %arg3[%c1, %c0_7, %c0_8] : memref<9x8x4xbf16, #tpu.memory_space<vmem>>, vector<1x8x4xbf16>
    %9 = vector.shape_cast %8 : vector<1x8x4xbf16> to vector<8x4xbf16>
    %10 = vector.extract_strided_slice %1 {offsets = [0, 1], sizes = [4, 144], strides = [1, 1]} : vector<4x198xbf16> to vector<4x144xbf16>
    %cst_9 = arith.constant dense<0.000000e+00> : vector<8x144xf32>
    %11 = tpu.matmul %9, %10, %cst_9 {dimension_numbers = #tpu.dot_dimension_numbers<[1], [0], [0], [1], [0, 0, 1, 1], [], []>} : vector<8x4xbf16>, vector<4x144xbf16>, vector<8x144xf32> -> vector<8x144xf32>
    %12 = arith.addf %7, %11 : vector<8x144xf32>
    %c2 = arith.constant 2 : index
    %c0_10 = arith.constant 0 : index
    %c0_11 = arith.constant 0 : index
    %13 = vector.load %arg3[%c2, %c0_10, %c0_11] : memref<9x8x4xbf16, #tpu.memory_space<vmem>>, vector<1x8x4xbf16>
    %14 = vector.shape_cast %13 : vector<1x8x4xbf16> to vector<8x4xbf16>
    %15 = vector.extract_strided_slice %1 {offsets = [0, 2], sizes = [4, 144], strides = [1, 1]} : vector<4x198xbf16> to vector<4x144xbf16>
    %cst_12 = arith.constant dense<0.000000e+00> : vector<8x144xf32>
    %16 = tpu.matmul %14, %15, %cst_12 {dimension_numbers = #tpu.dot_dimension_numbers<[1], [0], [0], [1], [0, 0, 1, 1], [], []>} : vector<8x4xbf16>, vector<4x144xbf16>, vector<8x144xf32> -> vector<8x144xf32>
    %17 = arith.addf %12, %16 : vector<8x144xf32>
    %c3 = arith.constant 3 : index
    %c0_13 = arith.constant 0 : index
    %c0_14 = arith.constant 0 : index
    %18 = vector.load %arg3[%c3, %c0_13, %c0_14] : memref<9x8x4xbf16, #tpu.memory_space<vmem>>, vector<1x8x4xbf16>
    %19 = vector.shape_cast %18 : vector<1x8x4xbf16> to vector<8x4xbf16>
    %20 = vector.extract_strided_slice %1 {offsets = [0, 18], sizes = [4, 144], strides = [1, 1]} : vector<4x198xbf16> to vector<4x144xbf16>
    %cst_15 = arith.constant dense<0.000000e+00> : vector<8x144xf32>
    %21 = tpu.matmul %19, %20, %cst_15 {dimension_numbers = #tpu.dot_dimension_numbers<[1], [0], [0], [1], [0, 0, 1, 1], [], []>} : vector<8x4xbf16>, vector<4x144xbf16>, vector<8x144xf32> -> vector<8x144xf32>
    %22 = arith.addf %17, %21 : vector<8x144xf32>
    %c4 = arith.constant 4 : index
    %c0_16 = arith.constant 0 : index
    %c0_17 = arith.constant 0 : index
    %23 = vector.load %arg3[%c4, %c0_16, %c0_17] : memref<9x8x4xbf16, #tpu.memory_space<vmem>>, vector<1x8x4xbf16>
    %24 = vector.shape_cast %23 : vector<1x8x4xbf16> to vector<8x4xbf16>
    %25 = vector.extract_strided_slice %1 {offsets = [0, 19], sizes = [4, 144], strides = [1, 1]} : vector<4x198xbf16> to vector<4x144xbf16>
    %cst_18 = arith.constant dense<0.000000e+00> : vector<8x144xf32>
    %26 = tpu.matmul %24, %25, %cst_18 {dimension_numbers = #tpu.dot_dimension_numbers<[1], [0], [0], [1], [0, 0, 1, 1], [], []>} : vector<8x4xbf16>, vector<4x144xbf16>, vector<8x144xf32> -> vector<8x144xf32>
    %27 = arith.addf %22, %26 : vector<8x144xf32>
    %c5 = arith.constant 5 : index
    %c0_19 = arith.constant 0 : index
    %c0_20 = arith.constant 0 : index
    %28 = vector.load %arg3[%c5, %c0_19, %c0_20] : memref<9x8x4xbf16, #tpu.memory_space<vmem>>, vector<1x8x4xbf16>
    %29 = vector.shape_cast %28 : vector<1x8x4xbf16> to vector<8x4xbf16>
    %30 = vector.extract_strided_slice %1 {offsets = [0, 20], sizes = [4, 144], strides = [1, 1]} : vector<4x198xbf16> to vector<4x144xbf16>
    %cst_21 = arith.constant dense<0.000000e+00> : vector<8x144xf32>
    %31 = tpu.matmul %29, %30, %cst_21 {dimension_numbers = #tpu.dot_dimension_numbers<[1], [0], [0], [1], [0, 0, 1, 1], [], []>} : vector<8x4xbf16>, vector<4x144xbf16>, vector<8x144xf32> -> vector<8x144xf32>
    %32 = arith.addf %27, %31 : vector<8x144xf32>
    %c6 = arith.constant 6 : index
    %c0_22 = arith.constant 0 : index
    %c0_23 = arith.constant 0 : index
    %33 = vector.load %arg3[%c6, %c0_22, %c0_23] : memref<9x8x4xbf16, #tpu.memory_space<vmem>>, vector<1x8x4xbf16>
    %34 = vector.shape_cast %33 : vector<1x8x4xbf16> to vector<8x4xbf16>
    %35 = vector.extract_strided_slice %1 {offsets = [0, 36], sizes = [4, 144], strides = [1, 1]} : vector<4x198xbf16> to vector<4x144xbf16>
    %cst_24 = arith.constant dense<0.000000e+00> : vector<8x144xf32>
    %36 = tpu.matmul %34, %35, %cst_24 {dimension_numbers = #tpu.dot_dimension_numbers<[1], [0], [0], [1], [0, 0, 1, 1], [], []>} : vector<8x4xbf16>, vector<4x144xbf16>, vector<8x144xf32> -> vector<8x144xf32>
    %37 = arith.addf %32, %36 : vector<8x144xf32>
    %c7 = arith.constant 7 : index
    %c0_25 = arith.constant 0 : index
    %c0_26 = arith.constant 0 : index
    %38 = vector.load %arg3[%c7, %c0_25, %c0_26] : memref<9x8x4xbf16, #tpu.memory_space<vmem>>, vector<1x8x4xbf16>
    %39 = vector.shape_cast %38 : vector<1x8x4xbf16> to vector<8x4xbf16>
    %40 = vector.extract_strided_slice %1 {offsets = [0, 37], sizes = [4, 144], strides = [1, 1]} : vector<4x198xbf16> to vector<4x144xbf16>
    %cst_27 = arith.constant dense<0.000000e+00> : vector<8x144xf32>
    %41 = tpu.matmul %39, %40, %cst_27 {dimension_numbers = #tpu.dot_dimension_numbers<[1], [0], [0], [1], [0, 0, 1, 1], [], []>} : vector<8x4xbf16>, vector<4x144xbf16>, vector<8x144xf32> -> vector<8x144xf32>
    %42 = arith.addf %37, %41 : vector<8x144xf32>
    %c8 = arith.constant 8 : index
    %c0_28 = arith.constant 0 : index
    %c0_29 = arith.constant 0 : index
    %43 = vector.load %arg3[%c8, %c0_28, %c0_29] : memref<9x8x4xbf16, #tpu.memory_space<vmem>>, vector<1x8x4xbf16>
    %44 = vector.shape_cast %43 : vector<1x8x4xbf16> to vector<8x4xbf16>
    %45 = vector.extract_strided_slice %1 {offsets = [0, 38], sizes = [4, 144], strides = [1, 1]} : vector<4x198xbf16> to vector<4x144xbf16>
    %cst_30 = arith.constant dense<0.000000e+00> : vector<8x144xf32>
    %46 = tpu.matmul %44, %45, %cst_30 {dimension_numbers = #tpu.dot_dimension_numbers<[1], [0], [0], [1], [0, 0, 1, 1], [], []>} : vector<8x4xbf16>, vector<4x144xbf16>, vector<8x144xf32> -> vector<8x144xf32>
    %47 = arith.addf %42, %46 : vector<8x144xf32>
    %c0_31 = arith.constant 0 : index
    %c0_32 = arith.constant 0 : index
    %c0_33 = arith.constant 0 : index
    %c0_34 = arith.constant 0 : index
    %48 = vector.load %arg4[%c0_31, %c0_32, %c0_33, %c0_34] : memref<1x1x8x144xf32, #tpu.memory_space<vmem>>, vector<1x1x8x144xf32>
    %49 = vector.shape_cast %48 : vector<1x1x8x144xf32> to vector<8x144xf32>
    %50 = vector.shape_cast %47 : vector<8x144xf32> to vector<1x1x8x144xf32>
    tpu.vector_store %arg4[%c0_31, %c0_32, %c0_33, %c0_34], %50 {strides = array<i32>} : memref<1x1x8x144xf32, #tpu.memory_space<vmem>>, vector<1x1x8x144xf32>,
    return
  }
  func.func @transform_0(%arg0: i32, %arg1: i32) -> (i32, i32, i32, i32) {
    %c0_i32 = arith.constant 0 : i32
    %c0_i32_0 = arith.constant 0 : i32
    %c0_i32_1 = arith.constant 0 : i32
    return %arg0, %arg1, %c0_i32, %c0_i32_0 : i32, i32, i32, i32
  }
  func.func @transform_1(%arg0: i32, %arg1: i32) -> (i32, i32, i32) {
    %c0_i32 = arith.constant 0 : i32
    %c0_i32_0 = arith.constant 0 : i32
    %c0_i32_1 = arith.constant 0 : i32
    %c0_i32_2 = arith.constant 0 : i32
    return %c0_i32, %c0_i32_0, %c0_i32_1 : i32, i32, i32
  }
  func.func @transform_2(%arg0: i32, %arg1: i32) -> (i32, i32, i32, i32) {
    %c0_i32 = arith.constant 0 : i32
    %c0_i32_0 = arith.constant 0 : i32
    %c0_i32_1 = arith.constant 0 : i32
    return %arg0, %arg1, %c0_i32, %c0_i32_0 : i32, i32, i32, i32
  }
}

</mosaic_0001>

<llo_original>
// kernel: upsample_with_pixelshuffle.1
$region0: #{upsample_with_pixelshuffle.1}
  #allocation0 [shape = 'u32[]', space=smem, size = 0x4, offset = 0x4, fixed_abs, tag = 'smem constant byte address 0x4 - core index']
  #allocation1 [shape = 'u32[144,128]{1,0:T(1,128)}', space=vmem, size = 0x12000, scoped, tag = 'internal scratch']
  %s0 = inlined_call_operand.vmem [shape: bf16[2,2,4,198], index: 0, kind: input, shape index: {}]
  %s1 = inlined_call_operand.vmem [shape: bf16[9,8,4], index: 1, kind: input, shape index: {}]
  %s2 = inlined_call_operand.vmem [shape: f32[2,2,8,144], index: 2, kind: output, shape index: {}]
  %s3 = sld [smem:[#allocation0]]
  $region41: #{upsample_with_pixelshuffle.1} parent=0
    _
  %s5 = ssub.s32 1, %s3
  %s6 = scalar_select 0, %s5, %s3
  loop: start=0, step=1, limit=6
  $region2: #{upsample_with_pixelshuffle.1} parent=0 // loop_pre_header
    _
  $region3: #{upsample_with_pixelshuffle.1} parent=0 // loop_header
    %s8 = sphi 0, %s12
    %p9 = scmp.ge.s32.totalorder %s8, 6
    %s15 = sphi 0, %s27
    %s16 = sphi 0, %s23
    %s17 = sphi 0, %s15
    %s18 = sphi 0, %s16
    %s19 = sphi 0, %s17
    %s20 = sphi 0, %s18
    %s32 = sphi 0, %s34
    %s35 = sphi 0, %s32
    %s36 = sphi 0, %s35
    %s52 = sphi 0, %s36
    %s56 = sphi 0, %s56
    %s58 = sphi 0, %s56
    %s59 = sphi 0, %s58
    %s73 = sphi 0, %s59
    %s81 = sphi 0, %s83
    %s84 = sphi 0, %s81
    %s85 = sphi 0, %s84
    %s101 = sphi 0, %s85
  $region4: #{upsample_with_pixelshuffle.1} parent=0 // loop_header_branch
    %11 = sbr.rel (%p9) target = $region8
  $region5: #{upsample_with_pixelshuffle.1} parent=0 // loop_body
    %s13 = ssub.s32 %s8, 1
    %s14 = ssub.s32 %s8, 2
    %s21 = sadd.s32 1, %s16
    %p22 = scmp.ge.s32.totalorder %s21, 2
    %s23 = scalar_select %p22, 0, %s21
    %s24 = sadd.s32 1, %s15
    %s25 = scalar_select %p22, %s24, %s15
    %p26 = scmp.ge.s32.totalorder %s25, 2
    %s27 = scalar_select %p26, 0, %s25
    %s28 = ssub.s32 %s15, %s27
    %s29 = ssub.s32 %s16, %s23
    %s30 = sor.u32 %s28, %s29
    %p31 = scmp.eq.s32.totalorder %s30, 0
    %s33 = sadd.s32 %s32, 1
    %s34 = scalar_select %p31, %s32, %s33
    %p37 = pneg %p31
    %p38 = scmp.eq.s32.totalorder %s8, 3
    %p39 = por %p37, %p38
    %p40 = scmp.ne.s32.totalorder %s32, %s35
    %p41 = scmp.eq.s32.totalorder %s8, 0
    %p42 = por %p40, %p41
    %p43 = scmp.ne.s32.totalorder %s32, %s35
    %p44 = scmp.eq.s32.totalorder %s13, 3
    %p45 = por %p43, %p44
    %p46 = scmp.ne.s32.totalorder %s35, %s36
    %p47 = scmp.eq.s32.totalorder %s13, 0
    %p48 = por %p46, %p47
    %p49 = scmp.ne.s32.totalorder %s35, %s36
    %p50 = scmp.eq.s32.totalorder %s14, 3
    %p51 = por %p49, %p50
    %p53 = scmp.ne.s32.totalorder %s36, %s52
    %p54 = scmp.eq.s32.totalorder %s14, 0
    %p55 = por %p53, %p54
    %s57 = sadd.s32 %s56, 1
    %p60 = scmp.eq.s32.totalorder %s8, 3
    %p61 = scmp.ne.s32.totalorder %s56, %s58
    %p62 = scmp.eq.s32.totalorder %s8, 0
    %p63 = por %p61, %p62
    %p64 = scmp.ne.s32.totalorder %s56, %s58
    %p65 = scmp.eq.s32.totalorder %s13, 3
    %p66 = por %p64, %p65
    %p67 = scmp.ne.s32.totalorder %s58, %s59
    %p68 = scmp.eq.s32.totalorder %s13, 0
    %p69 = por %p67, %p68
    %p70 = scmp.ne.s32.totalorder %s58, %s59
    %p71 = scmp.eq.s32.totalorder %s14, 3
    %p72 = por %p70, %p71
    %p74 = scmp.ne.s32.totalorder %s59, %s73
    %p75 = scmp.eq.s32.totalorder %s14, 0
    %p76 = por %p74, %p75
    %s77 = ssub.s32 %s15, %s27
    %s78 = ssub.s32 %s16, %s23
    %s79 = sor.u32 %s77, %s78
    %p80 = scmp.eq.s32.totalorder %s79, 0
    %s82 = sadd.s32 %s81, 1
    %s83 = scalar_select %p80, %s81, %s82
    %p86 = pneg %p80
    %p87 = scmp.eq.s32.totalorder %s8, 3
    %p88 = por %p86, %p87
    %p89 = scmp.ne.s32.totalorder %s81, %s84
    %p90 = scmp.eq.s32.totalorder %s8, 0
    %p91 = por %p89, %p90
    %p92 = scmp.ne.s32.totalorder %s81, %s84
    %p93 = scmp.eq.s32.totalorder %s13, 3
    %p94 = por %p92, %p93
    %p95 = scmp.ne.s32.totalorder %s84, %s85
    %p96 = scmp.eq.s32.totalorder %s13, 0
    %p97 = por %p95, %p96
    %p98 = scmp.ne.s32.totalorder %s84, %s85
    %p99 = scmp.eq.s32.totalorder %s14, 3
    %p100 = por %p98, %p99
    %p102 = scmp.ne.s32.totalorder %s85, %s101
    %p103 = scmp.eq.s32.totalorder %s14, 0
    %p104 = por %p102, %p103
    %p105 = scmp.le.s32.totalorder 1, %s8
    %p106 = scmp.lt.s32.totalorder %s8, 5
    %p107 = pnand %p105, %p106
    %p108 = pneg %p107
    // Predicated region
    $region9: #{upsample_with_pixelshuffle.1} parent=5 // pred_check
      _
    $region10: #{upsample_with_pixelshuffle.1} parent=5 // pred_check_branch
      %110 = sbr.rel (%p107) target = $region12
    $region11: #{upsample_with_pixelshuffle.1} parent=5 // pred_region
      %s111 = ssub.s32 %s8, 1
      // Predicated region
      $region13: #{upsample_with_pixelshuffle.1} parent=11 // pred_check
        %p112 = pneg %p69
      $region14: #{upsample_with_pixelshuffle.1} parent=11 // pred_check_branch
        %114 = sbr.rel (%p112) target = $region16
      $region15: #{upsample_with_pixelshuffle.1} parent=11 // pred_region
        _
      $region16: #{upsample_with_pixelshuffle.1} parent=11 // pred_fallthru
        _
    $region12: #{upsample_with_pixelshuffle.1} parent=5 // pred_fallthru
      _
    %p115 = scmp.lt.s32.totalorder %s8, 4
    // Predicated region
    $region17: #{upsample_with_pixelshuffle.1} parent=5 // pred_check
      %p116 = pneg %p115
    $region18: #{upsample_with_pixelshuffle.1} parent=5 // pred_check_branch
      %118 = sbr.rel (%p116) target = $region20
    $region19: #{upsample_with_pixelshuffle.1} parent=5 // pred_region
      // Predicated region
      $region21: #{upsample_with_pixelshuffle.1} parent=19 // pred_check
        %p119 = pneg %p42
      $region22: #{upsample_with_pixelshuffle.1} parent=19 // pred_check_branch
        %121 = sbr.rel (%p119) target = $region24
      $region23: #{upsample_with_pixelshuffle.1} parent=19 // pred_region
        %p122 = scmp.lt.s32.totalorder %s15, 1
        %s123 = scalar_select %p122, %s15, 1
        %p124 = scmp.lt.s32.totalorder %s16, 1
        %s125 = scalar_select %p124, %s16, 1
        %s126 = smul.addr %s125, 2
        %s127 = smul.addr %s123, 4
        %s128 = sadd.s32 %s126, %s127
        %s129 = smul.addr %s128, 2
        %s130 = scalar_lea.vmem %s0, %s129
      $region24: #{upsample_with_pixelshuffle.1} parent=19 // pred_fallthru
        _
    $region20: #{upsample_with_pixelshuffle.1} parent=5 // pred_fallthru
      _
    %p131 = scmp.le.s32.totalorder 1, %s8
    %p132 = scmp.lt.s32.totalorder %s8, 5
    %p133 = pnand %p131, %p132
    %p134 = pneg %p133
    // Predicated region
    $region25: #{upsample_with_pixelshuffle.1} parent=5 // pred_check
      _
    $region26: #{upsample_with_pixelshuffle.1} parent=5 // pred_check_branch
      %136 = sbr.rel (%p133) target = $region28
    $region27: #{upsample_with_pixelshuffle.1} parent=5 // pred_region
      %s137 = ssub.s32 %s8, 1
      %p138 = scmp.lt.s32.totalorder %s17, 1
      %s139 = scalar_select %p138, %s17, 1
      %p140 = scmp.lt.s32.totalorder %s18, 1
      %s141 = scalar_select %p140, %s18, 1
      %s142 = smul.addr %s141, 2
      %s143 = smul.addr %s139, 4
      %s144 = sadd.s32 %s142, %s143
      %s145 = smul.addr %s144, 2
      %s146 = scalar_lea.vmem %s0, %s145
      %p147 = pneg %p48
      %p148 = pneg %p45
      %p149 = pneg %p69
      %p150 = pneg %p66
      %p151 = pneg %p97
      %p152 = pneg %p94
      %p153 = scmp.lt.s32.totalorder %s17, 1
      %s154 = scalar_select %p153, %s17, 1
      %p155 = scmp.lt.s32.totalorder %s18, 1
      %s156 = scalar_select %p155, %s18, 1
      %s157 = smul.addr %s156, 2
      %s158 = smul.addr %s154, 4
      %s159 = sadd.s32 %s157, %s158
      %s160 = smul.addr %s159, 8
      %s161 = scalar_lea.vmem %s2, %s160
      %p162 = scmp.lt.s32.totalorder %s17, 1
      %s163 = scalar_select %p162, %s17, 1
      %p164 = scmp.lt.s32.totalorder %s18, 1
      %s165 = scalar_select %p164, %s18, 1
      %s166 = smul.addr %s165, 2
      %s167 = smul.addr %s163, 4
      %s168 = sadd.s32 %s166, %s167
      %s169 = smul.addr %s168, 2
      %s170 = scalar_lea.vmem %s0, %s169
      %p171 = scmp.lt.s32.totalorder %s17, 1
      %s172 = scalar_select %p171, %s17, 1
      %p173 = scmp.lt.s32.totalorder %s18, 1
      %s174 = scalar_select %p173, %s18, 1
      %s175 = smul.addr %s174, 2
      %s176 = smul.addr %s172, 4
      %s177 = sadd.s32 %s175, %s176
      %s178 = smul.addr %s177, 8
      %s179 = scalar_lea.vmem %s2, %s178
      %v181 = vld [vmem:[%s170] sm:$0xf]
      %v182 = vld [vmem:[%s1] sm:$0xf]
      %s183 = scalar_lea.vmem %s1, 4
      %v184 = vld [vmem:[%s183] sm:$0xf]
      %v187 = vunpack.c.l.s4 1983009808
      %v188 = vunpack.c.0.s8 %v187
      %v189 = vlaneseq
      %v190 = vshrl.u32 %v189, 7
      %v191 = vsub.s32 %v188, %v190
      %v192 = vrot.slane %v181, %v191
      %v193 = vcombine.high %v192, %v192
      %194 = vrot.lane.b32.xlu0 %v192, 127
      %v195 = vpop.permute.xlu0 %194
      %196 = vrot.lane.b32.xlu0 %v193, 127
      %v197 = vpop.permute.xlu0 %196
      %vm198 = vcmask 1039360
      %v199 = vsel %vm198, %v195, %v197
      %vm200 = vcmask 31744
      %v202 = vsel %vm200, %v184, 0
      %vm204 = vcmask 1041408
      %v206 = vsel %vm204, %v199, 0
      %v209 = vsel %vm204, %v197, 0
      %211 = vmatprep.subr.bf16.mxu0 %v209
      %212 = vmatpush1.bf16.msra.mxu0 %v206
      %213 = vmatprep.subr.bf16.mxu0 0
      %214 = vmatpush1.bf16.msra.mxu0 0
      %215 = vmatprep.subr.bf16.mxu0 0
      %216 = vmatpush1.bf16.msra.mxu0 0
      %217 = vmatprep.subr.bf16.mxu0 0
      %218 = vmatpush1.bf16.msra.mxu0 0
      %219 = vmatprep.subr.bf16.mxu0 0
      %220 = vmatpush1.bf16.msra.mxu0 0
      %221 = vmatprep.subr.bf16.mxu0 0
      %222 = vmatpush1.bf16.msra.mxu0 0
      %223 = vmatprep.subr.bf16.mxu0 0
      %224 = vmatpush1.bf16.msra.mxu0 0
      %225 = vmatprep.subr.bf16.mxu0 0
      %226 = vmatpush1.bf16.msra.mxu0 0
      %227 = vmatprep.subr.bf16.mxu0 0
      %228 = vmatpush1.bf16.msra.mxu0 0
      %229 = vmatprep.subr.bf16.mxu0 0
      %230 = vmatpush1.bf16.msra.mxu0 0
      %231 = vmatprep.subr.bf16.mxu0 0
      %232 = vmatpush1.bf16.msra.mxu0 0
      %233 = vmatprep.subr.bf16.mxu0 0
      %234 = vmatpush1.bf16.msra.mxu0 0
      %235 = vmatprep.subr.bf16.mxu0 0
      %236 = vmatpush1.bf16.msra.mxu0 0
      %237 = vmatprep.subr.bf16.mxu0 0
      %238 = vmatpush1.bf16.msra.mxu0 0
      %239 = vmatprep.subr.bf16.mxu0 0
      %240 = vmatpush1.bf16.msra.mxu0 0
      %241 = vmatprep.subr.bf16.mxu0 0
      %242 = vmatpush1.bf16.msra.mxu0 0
      %243 = vmatprep.mubr.bf16.mxu0 0
      %244 = vmatmul.mubr.bf16.gmra.mrb[0].mxu0 %v202
      %v245 = vpop.f32.mrb[0].mxu0
      %v246 = vadd.f32 0.0, %v245
      %v247 = vpop.f32.mrb[0].mxu0
      %v248 = vadd.f32 0.0, %v247
      %v249 = vpop.f32.mrb[0].mxu0
      %v250 = vpop.f32.mrb[0].mxu0
      %251 = vdwg.mxu0
      %v253 = vsel %vm200, %v182, 0
      %v256 = vsel %vm204, %v192, 0
      %v259 = vsel %vm204, %v193, 0
      %261 = vmatprep.subr.bf16.mxu0 %v259
      %262 = vmatpush1.bf16.msra.mxu0 %v256
      %263 = vmatprep.subr.bf16.mxu0 0
      %264 = vmatpush1.bf16.msra.mxu0 0
      %265 = vmatprep.subr.bf16.mxu0 0
      %266 = vmatpush1.bf16.msra.mxu0 0
      %267 = vmatprep.subr.bf16.mxu0 0
      %268 = vmatpush1.bf16.msra.mxu0 0
      %269 = vmatprep.subr.bf16.mxu0 0
      %270 = vmatpush1.bf16.msra.mxu0 0
      %271 = vmatprep.subr.bf16.mxu0 0
      %272 = vmatpush1.bf16.msra.mxu0 0
      %273 = vmatprep.subr.bf16.mxu0 0
      %274 = vmatpush1.bf16.msra.mxu0 0
      %275 = vmatprep.subr.bf16.mxu0 0
      %276 = vmatpush1.bf16.msra.mxu0 0
      %277 = vmatprep.subr.bf16.mxu0 0
      %278 = vmatpush1.bf16.msra.mxu0 0
      %279 = vmatprep.subr.bf16.mxu0 0
      %280 = vmatpush1.bf16.msra.mxu0 0
      %281 = vmatprep.subr.bf16.mxu0 0
      %282 = vmatpush1.bf16.msra.mxu0 0
      %283 = vmatprep.subr.bf16.mxu0 0
      %284 = vmatpush1.bf16.msra.mxu0 0
      %285 = vmatprep.subr.bf16.mxu0 0
      %286 = vmatpush1.bf16.msra.mxu0 0
      %287 = vmatprep.subr.bf16.mxu0 0
      %288 = vmatpush1.bf16.msra.mxu0 0
      %289 = vmatprep.subr.bf16.mxu0 0
      %290 = vmatpush1.bf16.msra.mxu0 0
      %291 = vmatprep.subr.bf16.mxu0 0
      %292 = vmatpush1.bf16.msra.mxu0 0
      %293 = vmatprep.mubr.bf16.mxu0 0
      %294 = vmatmul.mubr.bf16.gmra.mrb[0].mxu0 %v253
      %v295 = vpop.f32.mrb[0].mxu0
      %v296 = vadd.f32 %v246, %v295
      %v297 = vpop.f32.mrb[0].mxu0
      %v298 = vadd.f32 %v248, %v297
      %v299 = vpop.f32.mrb[0].mxu0
      %v300 = vpop.f32.mrb[0].mxu0
      %301 = vdwg.mxu0
      %s302 = scalar_lea.vmem %s1, 8
      %v303 = vld [vmem:[%s302] sm:$0xf]
      %304 = vrot.lane.b32.xlu0 %v192, 126
      %v305 = vpop.permute.xlu0 %304
      %306 = vrot.lane.b32.xlu0 %v193, 126
      %v307 = vpop.permute.xlu0 %306
      %vm308 = vcmask 1031168
      %v309 = vsel %vm308, %v305, %v307
      %v311 = vsel %vm200, %v303, 0
      %v314 = vsel %vm204, %v309, 0
      %v317 = vsel %vm204, %v307, 0
      %319 = vmatprep.subr.bf16.mxu0 %v317
      %320 = vmatpush1.bf16.msra.mxu0 %v314
      %321 = vmatprep.subr.bf16.mxu0 0
      %322 = vmatpush1.bf16.msra.mxu0 0
      %323 = vmatprep.subr.bf16.mxu0 0
      %324 = vmatpush1.bf16.msra.mxu0 0
      %325 = vmatprep.subr.bf16.mxu0 0
      %326 = vmatpush1.bf16.msra.mxu0 0
      %327 = vmatprep.subr.bf16.mxu0 0
      %328 = vmatpush1.bf16.msra.mxu0 0
      %329 = vmatprep.subr.bf16.mxu0 0
      %330 = vmatpush1.bf16.msra.mxu0 0
      %331 = vmatprep.subr.bf16.mxu0 0
      %332 = vmatpush1.bf16.msra.mxu0 0
      %333 = vmatprep.subr.bf16.mxu0 0
      %334 = vmatpush1.bf16.msra.mxu0 0
      %335 = vmatprep.subr.bf16.mxu0 0
      %336 = vmatpush1.bf16.msra.mxu0 0
      %337 = vmatprep.subr.bf16.mxu0 0
      %338 = vmatpush1.bf16.msra.mxu0 0
      %339 = vmatprep.subr.bf16.mxu0 0
      %340 = vmatpush1.bf16.msra.mxu0 0
      %341 = vmatprep.subr.bf16.mxu0 0
      %342 = vmatpush1.bf16.msra.mxu0 0
      %343 = vmatprep.subr.bf16.mxu0 0
      %344 = vmatpush1.bf16.msra.mxu0 0
      %345 = vmatprep.subr.bf16.mxu0 0
      %346 = vmatpush1.bf16.msra.mxu0 0
      %347 = vmatprep.subr.bf16.mxu0 0
      %348 = vmatpush1.bf16.msra.mxu0 0
      %349 = vmatprep.subr.bf16.mxu0 0
      %350 = vmatpush1.bf16.msra.mxu0 0
      %351 = vmatprep.mubr.bf16.mxu0 0
      %352 = vmatmul.mubr.bf16.gmra.mrb[0].mxu0 %v311
      %v353 = vpop.f32.mrb[0].mxu0
      %v354 = vadd.f32 0.0, %v353
      %v355 = vpop.f32.mrb[0].mxu0
      %v356 = vadd.f32 0.0, %v355
      %v357 = vpop.f32.mrb[0].mxu0
      %v358 = vpop.f32.mrb[0].mxu0
      %359 = vdwg.mxu0
      %v360 = vadd.f32 %v296, %v354
      %v361 = vadd.f32 %v298, %v356
      %s362 = scalar_lea.vmem %s1, 12
      %v363 = vld [vmem:[%s362] sm:$0xf]
      %364 = vrot.lane.b32.xlu0 %v192, 110
      %v365 = vpop.permute.xlu0 %364
      %366 = vrot.lane.b32.xlu0 %v193, 110
      %v367 = vpop.permute.xlu0 %366
      %vm368 = vcmask 900096
      %v369 = vsel %vm368, %v365, %v367
      %v371 = vsel %vm200, %v363, 0
      %v374 = vsel %vm204, %v369, 0
      %v377 = vsel %vm204, %v367, 0
      %379 = vmatprep.subr.bf16.mxu0 %v377
      %380 = vmatpush1.bf16.msra.mxu0 %v374
      %381 = vmatprep.subr.bf16.mxu0 0
      %382 = vmatpush1.bf16.msra.mxu0 0
      %383 = vmatprep.subr.bf16.mxu0 0
      %384 = vmatpush1.bf16.msra.mxu0 0
      %385 = vmatprep.subr.bf16.mxu0 0
      %386 = vmatpush1.bf16.msra.mxu0 0
      %387 = vmatprep.subr.bf16.mxu0 0
      %388 = vmatpush1.bf16.msra.mxu0 0
      %389 = vmatprep.subr.bf16.mxu0 0
      %390 = vmatpush1.bf16.msra.mxu0 0
      %391 = vmatprep.subr.bf16.mxu0 0
      %392 = vmatpush1.bf16.msra.mxu0 0
      %393 = vmatprep.subr.bf16.mxu0 0
      %394 = vmatpush1.bf16.msra.mxu0 0
      %395 = vmatprep.subr.bf16.mxu0 0
      %396 = vmatpush1.bf16.msra.mxu0 0
      %397 = vmatprep.subr.bf16.mxu0 0
      %398 = vmatpush1.bf16.msra.mxu0 0
      %399 = vmatprep.subr.bf16.mxu0 0
      %400 = vmatpush1.bf16.msra.mxu0 0
      %401 = vmatprep.subr.bf16.mxu0 0
      %402 = vmatpush1.bf16.msra.mxu0 0
      %403 = vmatprep.subr.bf16.mxu0 0
      %404 = vmatpush1.bf16.msra.mxu0 0
      %405 = vmatprep.subr.bf16.mxu0 0
      %406 = vmatpush1.bf16.msra.mxu0 0
      %407 = vmatprep.subr.bf16.mxu0 0
      %408 = vmatpush1.bf16.msra.mxu0 0
      %409 = vmatprep.subr.bf16.mxu0 0
      %410 = vmatpush1.bf16.msra.mxu0 0
      %411 = vmatprep.mubr.bf16.mxu0 0
      %412 = vmatmul.mubr.bf16.gmra.mrb[0].mxu0 %v371
      %v413 = vpop.f32.mrb[0].mxu0
      %v414 = vadd.f32 0.0, %v413
      %v415 = vpop.f32.mrb[0].mxu0
      %v416 = vadd.f32 0.0, %v415
      %v417 = vpop.f32.mrb[0].mxu0
      %v418 = vpop.f32.mrb[0].mxu0
      %419 = vdwg.mxu0
      %v420 = vadd.f32 %v360, %v414
      %v421 = vadd.f32 %v361, %v416
      %s422 = scalar_lea.vmem %s1, 16
      %v423 = vld [vmem:[%s422] sm:$0xf]
      %424 = vrot.lane.b32.xlu0 %v192, 109
      %v425 = vpop.permute.xlu0 %424
      %426 = vrot.lane.b32.xlu0 %v193, 109
      %v427 = vpop.permute.xlu0 %426
      %vm428 = vcmask 891904
      %v429 = vsel %vm428, %v425, %v427
      %v431 = vsel %vm200, %v423, 0
      %v434 = vsel %vm204, %v429, 0
      %v437 = vsel %vm204, %v427, 0
      %439 = vmatprep.subr.bf16.mxu0 %v437
      %440 = vmatpush1.bf16.msra.mxu0 %v434
      %441 = vmatprep.subr.bf16.mxu0 0
      %442 = vmatpush1.bf16.msra.mxu0 0
      %443 = vmatprep.subr.bf16.mxu0 0
      %444 = vmatpush1.bf16.msra.mxu0 0
      %445 = vmatprep.subr.bf16.mxu0 0
      %446 = vmatpush1.bf16.msra.mxu0 0
      %447 = vmatprep.subr.bf16.mxu0 0
      %448 = vmatpush1.bf16.msra.mxu0 0
      %449 = vmatprep.subr.bf16.mxu0 0
      %450 = vmatpush1.bf16.msra.mxu0 0
      %451 = vmatprep.subr.bf16.mxu0 0
      %452 = vmatpush1.bf16.msra.mxu0 0
      %453 = vmatprep.subr.bf16.mxu0 0
      %454 = vmatpush1.bf16.msra.mxu0 0
      %455 = vmatprep.subr.bf16.mxu0 0
      %456 = vmatpush1.bf16.msra.mxu0 0
      %457 = vmatprep.subr.bf16.mxu0 0
      %458 = vmatpush1.bf16.msra.mxu0 0
      %459 = vmatprep.subr.bf16.mxu0 0
      %460 = vmatpush1.bf16.msra.mxu0 0
      %461 = vmatprep.subr.bf16.mxu0 0
      %462 = vmatpush1.bf16.msra.mxu0 0
      %463 = vmatprep.subr.bf16.mxu0 0
      %464 = vmatpush1.bf16.msra.mxu0 0
      %465 = vmatprep.subr.bf16.mxu0 0
      %466 = vmatpush1.bf16.msra.mxu0 0
      %467 = vmatprep.subr.bf16.mxu0 0
      %468 = vmatpush1.bf16.msra.mxu0 0
      %469 = vmatprep.subr.bf16.mxu0 0
      %470 = vmatpush1.bf16.msra.mxu0 0
      %471 = vmatprep.mubr.bf16.mxu0 0
      %472 = vmatmul.mubr.bf16.gmra.mrb[0].mxu0 %v431
      %v473 = vpop.f32.mrb[0].mxu0
      %v474 = vadd.f32 0.0, %v473
      %v475 = vpop.f32.mrb[0].mxu0
      %v476 = vadd.f32 0.0, %v475
      %v477 = vpop.f32.mrb[0].mxu0
      %v478 = vpop.f32.mrb[0].mxu0
      %479 = vdwg.mxu0
      %v480 = vadd.f32 %v420, %v474
      %v481 = vadd.f32 %v421, %v476
      %s482 = scalar_lea.vmem %s1, 20
      %v483 = vld [vmem:[%s482] sm:$0xf]
      %484 = vrot.lane.b32.xlu0 %v192, 108
      %v485 = vpop.permute.xlu0 %484
      %486 = vrot.lane.b32.xlu0 %v193, 108
      %v487 = vpop.permute.xlu0 %486
      %vm488 = vcmask 883712
      %v489 = vsel %vm488, %v485, %v487
      %v491 = vsel %vm200, %v483, 0
      %v494 = vsel %vm204, %v489, 0
      %v497 = vsel %vm204, %v487, 0
      %499 = vmatprep.subr.bf16.mxu0 %v497
      %500 = vmatpush1.bf16.msra.mxu0 %v494
      %501 = vmatprep.subr.bf16.mxu0 0
      %502 = vmatpush1.bf16.msra.mxu0 0
      %503 = vmatprep.subr.bf16.mxu0 0
      %504 = vmatpush1.bf16.msra.mxu0 0
      %505 = vmatprep.subr.bf16.mxu0 0
      %506 = vmatpush1.bf16.msra.mxu0 0
      %507 = vmatprep.subr.bf16.mxu0 0
      %508 = vmatpush1.bf16.msra.mxu0 0
      %509 = vmatprep.subr.bf16.mxu0 0
      %510 = vmatpush1.bf16.msra.mxu0 0
      %511 = vmatprep.subr.bf16.mxu0 0
      %512 = vmatpush1.bf16.msra.mxu0 0
      %513 = vmatprep.subr.bf16.mxu0 0
      %514 = vmatpush1.bf16.msra.mxu0 0
      %515 = vmatprep.subr.bf16.mxu0 0
      %516 = vmatpush1.bf16.msra.mxu0 0
      %517 = vmatprep.subr.bf16.mxu0 0
      %518 = vmatpush1.bf16.msra.mxu0 0
      %519 = vmatprep.subr.bf16.mxu0 0
      %520 = vmatpush1.bf16.msra.mxu0 0
      %521 = vmatprep.subr.bf16.mxu0 0
      %522 = vmatpush1.bf16.msra.mxu0 0
      %523 = vmatprep.subr.bf16.mxu0 0
      %524 = vmatpush1.bf16.msra.mxu0 0
      %525 = vmatprep.subr.bf16.mxu0 0
      %526 = vmatpush1.bf16.msra.mxu0 0
      %527 = vmatprep.subr.bf16.mxu0 0
      %528 = vmatpush1.bf16.msra.mxu0 0
      %529 = vmatprep.subr.bf16.mxu0 0
      %530 = vmatpush1.bf16.msra.mxu0 0
      %531 = vmatprep.mubr.bf16.mxu0 0
      %532 = vmatmul.mubr.bf16.gmra.mrb[0].mxu0 %v491
      %v533 = vpop.f32.mrb[0].mxu0
      %v534 = vadd.f32 0.0, %v533
      %v535 = vpop.f32.mrb[0].mxu0
      %v536 = vadd.f32 0.0, %v535
      %v537 = vpop.f32.mrb[0].mxu0
      %v538 = vpop.f32.mrb[0].mxu0
      %539 = vdwg.mxu0
      %v540 = vadd.f32 %v480, %v534
      %v541 = vadd.f32 %v481, %v536
      %s542 = scalar_lea.vmem %s1, 24
      %v543 = vld [vmem:[%s542] sm:$0xf]
      %544 = vrot.lane.b32.xlu0 %v192, 92
      %v545 = vpop.permute.xlu0 %544
      %546 = vrot.lane.b32.xlu0 %v193, 92
      %v547 = vpop.permute.xlu0 %546
      %vm548 = vcmask 752640
      %v549 = vsel %vm548, %v545, %v547
      %v551 = vsel %vm200, %v543, 0
      %v554 = vsel %vm204, %v549, 0
      %v557 = vsel %vm204, %v547, 0
      %559 = vmatprep.subr.bf16.mxu0 %v557
      %560 = vmatpush1.bf16.msra.mxu0 %v554
      %561 = vmatprep.subr.bf16.mxu0 0
      %562 = vmatpush1.bf16.msra.mxu0 0
      %563 = vmatprep.subr.bf16.mxu0 0
      %564 = vmatpush1.bf16.msra.mxu0 0
      %565 = vmatprep.subr.bf16.mxu0 0
      %566 = vmatpush1.bf16.msra.mxu0 0
      %567 = vmatprep.subr.bf16.mxu0 0
      %568 = vmatpush1.bf16.msra.mxu0 0
      %569 = vmatprep.subr.bf16.mxu0 0
      %570 = vmatpush1.bf16.msra.mxu0 0
      %571 = vmatprep.subr.bf16.mxu0 0
      %572 = vmatpush1.bf16.msra.mxu0 0
      %573 = vmatprep.subr.bf16.mxu0 0
      %574 = vmatpush1.bf16.msra.mxu0 0
      %575 = vmatprep.subr.bf16.mxu0 0
      %576 = vmatpush1.bf16.msra.mxu0 0
      %577 = vmatprep.subr.bf16.mxu0 0
      %578 = vmatpush1.bf16.msra.mxu0 0
      %579 = vmatprep.subr.bf16.mxu0 0
      %580 = vmatpush1.bf16.msra.mxu0 0
      %581 = vmatprep.subr.bf16.mxu0 0
      %582 = vmatpush1.bf16.msra.mxu0 0
      %583 = vmatprep.subr.bf16.mxu0 0
      %584 = vmatpush1.bf16.msra.mxu0 0
      %585 = vmatprep.subr.bf16.mxu0 0
      %586 = vmatpush1.bf16.msra.mxu0 0
      %587 = vmatprep.subr.bf16.mxu0 0
      %588 = vmatpush1.bf16.msra.mxu0 0
      %589 = vmatprep.subr.bf16.mxu0 0
      %590 = vmatpush1.bf16.msra.mxu0 0
      %591 = vmatprep.mubr.bf16.mxu0 0
      %592 = vmatmul.mubr.bf16.gmra.mrb[0].mxu0 %v551
      %v593 = vpop.f32.mrb[0].mxu0
      %v594 = vadd.f32 0.0, %v593
      %v595 = vpop.f32.mrb[0].mxu0
      %v596 = vadd.f32 0.0, %v595
      %v597 = vpop.f32.mrb[0].mxu0
      %v598 = vpop.f32.mrb[0].mxu0
      %599 = vdwg.mxu0
      %v600 = vadd.f32 %v540, %v594
      %v601 = vadd.f32 %v541, %v596
      %s602 = scalar_lea.vmem %s1, 28
      %v603 = vld [vmem:[%s602] sm:$0xf]
      %604 = vrot.lane.b32.xlu0 %v192, 91
      %v605 = vpop.permute.xlu0 %604
      %606 = vrot.lane.b32.xlu0 %v193, 91
      %v607 = vpop.permute.xlu0 %606
      %vm608 = vcmask 744448
      %v609 = vsel %vm608, %v605, %v607
      %v611 = vsel %vm200, %v603, 0
      %v614 = vsel %vm204, %v609, 0
      %v617 = vsel %vm204, %v607, 0
      %619 = vmatprep.subr.bf16.mxu0 %v617
      %620 = vmatpush1.bf16.msra.mxu0 %v614
      %621 = vmatprep.subr.bf16.mxu0 0
      %622 = vmatpush1.bf16.msra.mxu0 0
      %623 = vmatprep.subr.bf16.mxu0 0
      %624 = vmatpush1.bf16.msra.mxu0 0
      %625 = vmatprep.subr.bf16.mxu0 0
      %626 = vmatpush1.bf16.msra.mxu0 0
      %627 = vmatprep.subr.bf16.mxu0 0
      %628 = vmatpush1.bf16.msra.mxu0 0
      %629 = vmatprep.subr.bf16.mxu0 0
      %630 = vmatpush1.bf16.msra.mxu0 0
      %631 = vmatprep.subr.bf16.mxu0 0
      %632 = vmatpush1.bf16.msra.mxu0 0
      %633 = vmatprep.subr.bf16.mxu0 0
      %634 = vmatpush1.bf16.msra.mxu0 0
      %635 = vmatprep.subr.bf16.mxu0 0
      %636 = vmatpush1.bf16.msra.mxu0 0
      %637 = vmatprep.subr.bf16.mxu0 0
      %638 = vmatpush1.bf16.msra.mxu0 0
      %639 = vmatprep.subr.bf16.mxu0 0
      %640 = vmatpush1.bf16.msra.mxu0 0
      %641 = vmatprep.subr.bf16.mxu0 0
      %642 = vmatpush1.bf16.msra.mxu0 0
      %643 = vmatprep.subr.bf16.mxu0 0
      %644 = vmatpush1.bf16.msra.mxu0 0
      %645 = vmatprep.subr.bf16.mxu0 0
      %646 = vmatpush1.bf16.msra.mxu0 0
      %647 = vmatprep.subr.bf16.mxu0 0
      %648 = vmatpush1.bf16.msra.mxu0 0
      %649 = vmatprep.subr.bf16.mxu0 0
      %650 = vmatpush1.bf16.msra.mxu0 0
      %651 = vmatprep.mubr.bf16.mxu0 0
      %652 = vmatmul.mubr.bf16.gmra.mrb[0].mxu0 %v611
      %v653 = vpop.f32.mrb[0].mxu0
      %v654 = vadd.f32 0.0, %v653
      %v655 = vpop.f32.mrb[0].mxu0
      %v656 = vadd.f32 0.0, %v655
      %v657 = vpop.f32.mrb[0].mxu0
      %v658 = vpop.f32.mrb[0].mxu0
      %659 = vdwg.mxu0
      %v660 = vadd.f32 %v600, %v654
      %v661 = vadd.f32 %v601, %v656
      %s662 = scalar_lea.vmem %s1, 32
      %v663 = vld [vmem:[%s662] sm:$0xf]
      %664 = vrot.lane.b32.xlu0 %v192, 90
      %v665 = vpop.permute.xlu0 %664
      %666 = vrot.lane.b32.xlu0 %v193, 90
      %v667 = vpop.permute.xlu0 %666
      %vm668 = vcmask 736256
      %v669 = vsel %vm668, %v665, %v667
      %v671 = vsel %vm200, %v663, 0
      %v674 = vsel %vm204, %v669, 0
      %v677 = vsel %vm204, %v667, 0
      %679 = vmatprep.subr.bf16.mxu0 %v677
      %680 = vmatpush1.bf16.msra.mxu0 %v674
      %681 = vmatprep.subr.bf16.mxu0 0
      %682 = vmatpush1.bf16.msra.mxu0 0
      %683 = vmatprep.subr.bf16.mxu0 0
      %684 = vmatpush1.bf16.msra.mxu0 0
      %685 = vmatprep.subr.bf16.mxu0 0
      %686 = vmatpush1.bf16.msra.mxu0 0
      %687 = vmatprep.subr.bf16.mxu0 0
      %688 = vmatpush1.bf16.msra.mxu0 0
      %689 = vmatprep.subr.bf16.mxu0 0
      %690 = vmatpush1.bf16.msra.mxu0 0
      %691 = vmatprep.subr.bf16.mxu0 0
      %692 = vmatpush1.bf16.msra.mxu0 0
      %693 = vmatprep.subr.bf16.mxu0 0
      %694 = vmatpush1.bf16.msra.mxu0 0
      %695 = vmatprep.subr.bf16.mxu0 0
      %696 = vmatpush1.bf16.msra.mxu0 0
      %697 = vmatprep.subr.bf16.mxu0 0
      %698 = vmatpush1.bf16.msra.mxu0 0
      %699 = vmatprep.subr.bf16.mxu0 0
      %700 = vmatpush1.bf16.msra.mxu0 0
      %701 = vmatprep.subr.bf16.mxu0 0
      %702 = vmatpush1.bf16.msra.mxu0 0
      %703 = vmatprep.subr.bf16.mxu0 0
      %704 = vmatpush1.bf16.msra.mxu0 0
      %705 = vmatprep.subr.bf16.mxu0 0
      %706 = vmatpush1.bf16.msra.mxu0 0
      %707 = vmatprep.subr.bf16.mxu0 0
      %708 = vmatpush1.bf16.msra.mxu0 0
      %709 = vmatprep.subr.bf16.mxu0 0
      %710 = vmatpush1.bf16.msra.mxu0 0
      %711 = vmatprep.mubr.bf16.mxu0 0
      %712 = vmatmul.mubr.bf16.gmra.mrb[0].mxu0 %v671
      %v713 = vpop.f32.mrb[0].mxu0
      %v714 = vadd.f32 0.0, %v713
      %v715 = vpop.f32.mrb[0].mxu0
      %v716 = vadd.f32 0.0, %v715
      %v717 = vpop.f32.mrb[0].mxu0
      %v718 = vpop.f32.mrb[0].mxu0
      %719 = vdwg.mxu0
      %v720 = vadd.f32 %v660, %v714
      %v721 = vadd.f32 %v661, %v716
      %722 = vst [vmem:[%s179] sm:$0xff] %v720
      %vm723 = vcmask 130048
      %724 = vst.msk [vmem:[%s179 + $0x8] sm:$0xff] %vm723, %v721
      %p725 = scmp.lt.s32.totalorder %s17, 1
      %s726 = scalar_select %p725, %s17, 1
      %p727 = scmp.lt.s32.totalorder %s18, 1
      %s728 = scalar_select %p727, %s18, 1
      %s729 = smul.addr %s728, 2
      %s730 = smul.addr %s726, 4
      %s731 = sadd.s32 %s729, %s730
      %s732 = smul.addr %s731, 8
      %s733 = scalar_lea.vmem %s2, %s732
      // Predicated region
      $region29: #{upsample_with_pixelshuffle.1} parent=27 // pred_check
        %p734 = pneg %p94
      $region30: #{upsample_with_pixelshuffle.1} parent=27 // pred_check_branch
        %736 = sbr.rel (%p734) target = $region32
      $region31: #{upsample_with_pixelshuffle.1} parent=27 // pred_region
        _
      $region32: #{upsample_with_pixelshuffle.1} parent=27 // pred_fallthru
        _
    $region28: #{upsample_with_pixelshuffle.1} parent=5 // pred_fallthru
      _
    %p737 = scmp.le.s32.totalorder 2, %s8
    // Predicated region
    $region33: #{upsample_with_pixelshuffle.1} parent=5 // pred_check
      %p738 = pneg %p737
    $region34: #{upsample_with_pixelshuffle.1} parent=5 // pred_check_branch
      %740 = sbr.rel (%p738) target = $region36
    $region35: #{upsample_with_pixelshuffle.1} parent=5 // pred_region
      %s741 = ssub.s32 %s8, 2
      // Predicated region
      $region37: #{upsample_with_pixelshuffle.1} parent=35 // pred_check
        %p742 = pneg %p100
      $region38: #{upsample_with_pixelshuffle.1} parent=35 // pred_check_branch
        %744 = sbr.rel (%p742) target = $region40
      $region39: #{upsample_with_pixelshuffle.1} parent=35 // pred_region
        %p745 = scmp.lt.s32.totalorder %s19, 1
        %s746 = scalar_select %p745, %s19, 1
        %p747 = scmp.lt.s32.totalorder %s20, 1
        %s748 = scalar_select %p747, %s20, 1
        %s749 = smul.addr %s748, 2
        %s750 = smul.addr %s746, 4
        %s751 = sadd.s32 %s749, %s750
        %s752 = smul.addr %s751, 8
        %s753 = scalar_lea.vmem %s2, %s752
      $region40: #{upsample_with_pixelshuffle.1} parent=35 // pred_fallthru
        _
    $region36: #{upsample_with_pixelshuffle.1} parent=5 // pred_fallthru
      _
  $region6: #{upsample_with_pixelshuffle.1} parent=0 // loop_footer
    %s12 = sadd.s32 1, %s8
  $region7: #{upsample_with_pixelshuffle.1} parent=0 // loop_footer_branch
    %7 = sbr.rel target = $region3
  $region8: #{upsample_with_pixelshuffle.1} parent=0 // loop_exit
    _

</llo_original>
